<compile_context>
chip_gen: v7x
topology: tpu7x:2x2x1
jax: 0.10.0
libtpu: 0.0.40
codegen_flags: <defaults>
</compile_context>

<pallas_src>
import functools

import jax
import jax.numpy as jnp
from jax.experimental import pallas as pl
from jax.experimental.pallas import tpu as pltpu

CHANNEL_DIVISIBLE = 8
BN_EPS = 1e-5
LANE = 128


def make_divisible(v, divisor=CHANNEL_DIVISIBLE, min_val=None):
    if min_val is None:
        min_val = divisor
    new_v = max(min_val, int(v + divisor / 2) // divisor * divisor)
    if new_v < 0.9 * v:
        new_v += divisor
    return new_v


def round_up(v, m):
    return ((v + m - 1) // m) * m


def get_same_padding(kernel_size):
    return kernel_size // 2


def h_swish(x):
    # x * relu6(x + 3) / 6
    return x * jnp.clip(x + 3.0, 0.0, 6.0) * (1.0 / 6.0)


# ------------------------------------------------------------------ kernel ---
def mbconv_kernel(x_ref, w1_ref, b1_ref, wd_ref, b2_ref, w3_ref, b3_ref,
                  o_ref, hp_ref, *, L, L_out, K, stride, pad):
    # x_ref: (1, L, Cin)   one batch element, (length, channels) layout
    x = x_ref[0]                                                    # (L, Cin)
    mid_p = hp_ref.shape[1]

    # --- inverted_bottleneck: 1x1 conv (BN scale folded into weights) + h_swish
    h1 = jnp.dot(x, w1_ref[...], preferred_element_type=jnp.float32)  # (L, mid_p)
    h1 = h_swish(h1 + b1_ref[...])

    # --- depth_conv: depthwise conv (kernel K, stride, SAME pad) + bias + h_swish
    # Zero only the pad rows of the scratch, then write h1 into the middle.
    if pad > 0:
        hp_ref[:pad, :] = jnp.zeros((pad, mid_p), jnp.float32)
        hp_ref[pad + L:pad + L + pad, :] = jnp.zeros((pad, mid_p), jnp.float32)
    hp_ref[pad:pad + L, :] = h1                                     # (L+2*pad, mid_p)

    # Accumulate taps only at strided output positions (no per-row copy loop).
    acc = jnp.zeros((L_out, mid_p), jnp.float32)
    for k in range(K):                                              # K static taps
        if stride == 1:
            taps = hp_ref[k:k + L_out, :]
        else:
            taps = hp_ref[pl.ds(k, L_out, stride=stride), :]        # strided load
        acc = acc + taps * wd_ref[k:k + 1, :]
    h2 = h_swish(acc + b2_ref[...])                                 # (L_out, mid_p)

    # --- point_linear: 1x1 conv (BN scale folded) -- no activation
    out = jnp.dot(h2, w3_ref[...], preferred_element_type=jnp.float32)  # (L_out, Cout_p)
    o_ref[0] = (out + b3_ref[...]).astype(o_ref.dtype)


# ----------------------------------------------------------------- wrapper ---
def mbconv_forward_nlc(x_nlc, ki, *, kernel_size, stride):
    """Core entry point in (N, L, Cin) layout. Returns (N, L_out, Cout)."""
    N, L, Cin = x_nlc.shape
    pad = get_same_padding(kernel_size)
    L_out = (L + 2 * pad - kernel_size) // stride + 1
    mid_p = ki["w1t"].shape[1]
    Cout_p = ki["w3t"].shape[1]
    Cout = ki["cout"]

    kernel = functools.partial(mbconv_kernel, L=L, L_out=L_out, K=kernel_size,
                               stride=stride, pad=pad)

    out = pl.pallas_call(
        kernel,
        out_shape=jax.ShapeDtypeStruct((N, L_out, Cout_p), jnp.float32),
        grid_spec=pltpu.PrefetchScalarGridSpec(
            num_scalar_prefetch=0,
            grid=(N,),
            in_specs=[
                pl.BlockSpec((1, L, Cin), lambda b: (b, 0, 0)),
                pl.BlockSpec((Cin, mid_p), lambda b: (0, 0)),       # weights stay resident
                pl.BlockSpec((1, mid_p), lambda b: (0, 0)),
                pl.BlockSpec((kernel_size, mid_p), lambda b: (0, 0)),
                pl.BlockSpec((1, mid_p), lambda b: (0, 0)),
                pl.BlockSpec((mid_p, Cout_p), lambda b: (0, 0)),
                pl.BlockSpec((1, Cout_p), lambda b: (0, 0)),
            ],
            out_specs=pl.BlockSpec((1, L_out, Cout_p), lambda b: (b, 0, 0)),
            scratch_shapes=[
                pltpu.VMEM((L + 2 * pad, mid_p), jnp.float32),      # padded activations
            ],
        ),
        compiler_params=pltpu.CompilerParams(dimension_semantics=("parallel",)),
    )(x_nlc, ki["w1t"], ki["b1"], ki["wd"], ki["b2"], ki["w3t"], ki["b3"])

    return out[:, :, :Cout]                                         # drop channel padding


def mbconv_forward(x, ki, *, kernel_size, stride):
    """PyTorch-layout wrapper: x (N, Cin, L) -> (N, Cout, L_out).

    The transposes below are demo glue only; chain mbconv_forward_nlc in
    (N, L, C) layout across layers to avoid two full HBM passes per block.
    """
    x_t = jnp.transpose(x, (0, 2, 1))                               # (N, L, Cin)
    out = mbconv_forward_nlc(x_t, ki, kernel_size=kernel_size, stride=stride)
    return jnp.transpose(out, (0, 2, 1))                            # (N, Cout, L_out)


# ------------------------------------------------------------ params / glue ---
def init_params(key, in_channels, out_channels, expand_ratio, kernel_size):
    mid = make_divisible(round(in_channels * expand_ratio), CHANNEL_DIVISIBLE)
    ks = jax.random.split(key, 18)
    n = lambda k, s: 0.1 * jax.random.normal(k, s, jnp.float32)
    p = {
        "w1": n(ks[0], (mid, in_channels)),
        "b1": n(ks[1], (mid,)),
        "bn1_gamma": 1.0 + n(ks[2], (mid,)),
        "bn1_beta": n(ks[3], (mid,)),
        "bn1_mean": n(ks[4], (mid,)),
        "bn1_var": 1.0 + jax.random.uniform(ks[5], (mid,), jnp.float32),
        "wd": n(ks[6], (mid, 1, kernel_size)),            # depthwise: (mid, 1, K)
        "bd": n(ks[7], (mid,)),
        "bn2_gamma": 1.0 + n(ks[8], (mid,)),
        "bn2_beta": n(ks[9], (mid,)),
        "bn2_mean": n(ks[10], (mid,)),
        "bn2_var": 1.0 + jax.random.uniform(ks[11], (mid,), jnp.float32),
        "w3": n(ks[12], (out_channels, mid)),
        "b3": n(ks[13], (out_channels,)),
        "bn3_gamma": 1.0 + n(ks[14], (out_channels,)),
        "bn3_beta": n(ks[15], (out_channels,)),
        "bn3_mean": n(ks[16], (out_channels,)),
        "bn3_var": 1.0 + jax.random.uniform(ks[17], (out_channels,), jnp.float32),
    }
    return p


def fold_bn(gamma, beta, mean, var, conv_bias):
    scale = gamma * jax.lax.rsqrt(var + BN_EPS)
    bias = beta + scale * (conv_bias - mean)
    return scale, bias


def prepare_kernel_inputs(p):
    """Fold eval-mode BN into conv weights/biases and pad channel dims to 128."""
    s1, b1 = fold_bn(p["bn1_gamma"], p["bn1_beta"], p["bn1_mean"], p["bn1_var"], p["b1"])
    s2, b2 = fold_bn(p["bn2_gamma"], p["bn2_beta"], p["bn2_mean"], p["bn2_var"], p["bd"])
    s3, b3 = fold_bn(p["bn3_gamma"], p["bn3_beta"], p["bn3_mean"], p["bn3_var"], p["b3"])

    mid = p["w1"].shape[0]
    cout = p["w3"].shape[0]
    mid_p = round_up(mid, LANE)
    cout_p = round_up(cout, LANE)

    # Fold BN scales into weights (per output channel): kernel only adds biases.
    w1t = p["w1"].T * s1[None, :]                  # (Cin, mid)
    wd = p["wd"][:, 0, :].T * s2[None, :]          # (K, mid)
    w3t = p["w3"].T * s3[None, :]                  # (mid, Cout)

    pad_c = lambda a, n: jnp.pad(a, ((0, 0), (0, n - a.shape[1])))
    return dict(
        w1t=pad_c(w1t, mid_p),                                         # (Cin, mid_p)
        b1=pad_c(b1.reshape(1, -1), mid_p),                            # (1, mid_p)
        wd=pad_c(wd, mid_p),                                           # (K, mid_p)
        b2=pad_c(b2.reshape(1, -1), mid_p),                            # (1, mid_p)
        w3t=pad_c(jnp.pad(w3t, ((0, mid_p - mid), (0, 0))), cout_p),   # (mid_p, Cout_p)
        b3=pad_c(b3.reshape(1, -1), cout_p),                           # (1, Cout_p)
        cout=cout,
    )


def reference_forward(x, p, *, kernel_size, stride):
    """Pure-JAX reference of the PyTorch module (eval-mode BN), from raw params."""
    pad = get_same_padding(kernel_size)
    N, Cin, L = x.shape
    L_out = (L + 2 * pad - kernel_size) // stride + 1
    hi = jax.lax.Precision.HIGHEST

    def bn(y, g, be, m, v):
        s = g * jax.lax.rsqrt(v + BN_EPS)
        return y * s[None, :, None] + (be - m * s)[None, :, None]

    # inverted_bottleneck: 1x1 conv + BN + h_swish
    h = jnp.einsum("ncl,mc->nml", x, p["w1"], precision=hi) + p["b1"][None, :, None]
    h = h_swish(bn(h, p["bn1_gamma"], p["bn1_beta"], p["bn1_mean"], p["bn1_var"]))

    # depth_conv: depthwise conv + BN + h_swish
    hp = jnp.pad(h, ((0, 0), (0, 0), (pad, pad)))
    wd = p["wd"][:, 0, :]                                   # (mid, K)
    cols = []
    for t in range(L_out):
        win = hp[:, :, stride * t:stride * t + kernel_size]  # (N, mid, K)
        cols.append(jnp.einsum("nmk,mk->nm", win, wd, precision=hi))
    h = jnp.stack(cols, axis=2) + p["bd"][None, :, None]
    h = h_swish(bn(h, p["bn2_gamma"], p["bn2_beta"], p["bn2_mean"], p["bn2_var"]))

    # point_linear: 1x1 conv + BN (no activation)
    h = jnp.einsum("nml,om->nol", h, p["w3"], precision=hi) + p["b3"][None, :, None]
    return bn(h, p["bn3_gamma"], p["bn3_beta"], p["bn3_mean"], p["bn3_var"])


if __name__ == "__main__":
    key = jax.random.PRNGKey(0)
    N, Cin, L = 2, 4, 16
    Cout, expand_ratio, K, stride = 8, 6, 7, 2

    params = init_params(key, Cin, Cout, expand_ratio, K)
    kinputs = prepare_kernel_inputs(params)
    x = jax.random.normal(jax.random.fold_in(key, 99), (N, Cin, L), jnp.float32)

    out = mbconv_forward(x, kinputs, kernel_size=K, stride=stride)
    out = jax.block_until_ready(out)

    pad = get_same_padding(K)
    L_out = (L + 2 * pad - K) // stride + 1
    assert out.shape == (N, Cout, L_out), out.shape

    ref = reference_forward(x, params, kernel_size=K, stride=stride)
    max_err = float(jnp.max(jnp.abs(out - ref)))
    assert jnp.allclose(out, ref, atol=1e-3, rtol=1e-3), max_err

    print("KERNEL_OK")
</pallas_src>

<mosaic_0001>
module attributes {stable_mosaic.version = 11 : i64} {
  func.func @mbconv_kernel(%arg0: i32, %arg1: memref<1x16x4xf32, #tpu.memory_space<vmem>>, %arg2: memref<4x128xf32, #tpu.memory_space<vmem>>, %arg3: memref<1x128xf32, #tpu.memory_space<vmem>>, %arg4: memref<7x128xf32, #tpu.memory_space<vmem>>, %arg5: memref<1x128xf32, #tpu.memory_space<vmem>>, %arg6: memref<128x128xf32, #tpu.memory_space<vmem>>, %arg7: memref<1x128xf32, #tpu.memory_space<vmem>>, %arg8: memref<1x8x128xf32, #tpu.memory_space<vmem>>, %arg9: memref<22x128xf32, #tpu.memory_space<vmem>>) attributes {dimension_semantics = [#tpu.dimension_semantics<parallel>], iteration_bounds = array<i64: 2>, scalar_prefetch = 0 : i64, scratch_operands = 1 : i64, tpu.core_type = #tpu.core_type<tc>, window_params = [{transform_indices = @transform_0, window_bounds = array<i64: 1, 16, 4>}, {pipeline_mode = #tpu.pipeline_mode<synchronous>, transform_indices = @transform_1, window_bounds = array<i64: 4, 128>}, {pipeline_mode = #tpu.pipeline_mode<synchronous>, transform_indices = @transform_2, window_bounds = array<i64: 1, 128>}, {pipeline_mode = #tpu.pipeline_mode<synchronous>, transform_indices = @transform_3, window_bounds = array<i64: 7, 128>}, {pipeline_mode = #tpu.pipeline_mode<synchronous>, transform_indices = @transform_4, window_bounds = array<i64: 1, 128>}, {pipeline_mode = #tpu.pipeline_mode<synchronous>, transform_indices = @transform_5, window_bounds = array<i64: 128, 128>}, {pipeline_mode = #tpu.pipeline_mode<synchronous>, transform_indices = @transform_6, window_bounds = array<i64: 1, 128>}, {transform_indices = @transform_7, window_bounds = array<i64: 1, 8, 128>}]} {
    %c0 = arith.constant 0 : index
    %c0_0 = arith.constant 0 : index
    %c0_1 = arith.constant 0 : index
    %0 = vector.load %arg1[%c0, %c0_0, %c0_1] : memref<1x16x4xf32, #tpu.memory_space<vmem>>, vector<1x16x4xf32>
    %1 = vector.shape_cast %0 : vector<1x16x4xf32> to vector<16x4xf32>
    %c0_2 = arith.constant 0 : index
    %c0_3 = arith.constant 0 : index
    %2 = vector.load %arg2[%c0_2, %c0_3] : memref<4x128xf32, #tpu.memory_space<vmem>>, vector<4x128xf32>
    %cst = arith.constant dense<0.000000e+00> : vector<16x128xf32>
    %3 = tpu.matmul %1, %2, %cst {dimension_numbers = #tpu.dot_dimension_numbers<[1], [0], [0], [1], [0, 0, 1, 1], [], []>} : vector<16x4xf32>, vector<4x128xf32>, vector<16x128xf32> -> vector<16x128xf32>
    %c0_4 = arith.constant 0 : index
    %c0_5 = arith.constant 0 : index
    %4 = vector.load %arg3[%c0_4, %c0_5] : memref<1x128xf32, #tpu.memory_space<vmem>>, vector<1x128xf32>
    %5 = vector.broadcast %4 : vector<1x128xf32> to vector<16x128xf32>
    %6 = arith.addf %3, %5 : vector<16x128xf32>
    %cst_6 = arith.constant 3.000000e+00 : f32
    %7 = vector.broadcast %cst_6 : f32 to vector<16x128xf32>
    %8 = arith.addf %6, %7 : vector<16x128xf32>
    %cst_7 = arith.constant 0.000000e+00 : f32
    %cst_8 = arith.constant 6.000000e+00 : f32
    %9 = vector.broadcast %cst_7 : f32 to vector<16x128xf32>
    %10 = arith.maximumf %9, %8 : vector<16x128xf32>
    %11 = vector.broadcast %cst_8 : f32 to vector<16x128xf32>
    %12 = arith.minimumf %11, %10 : vector<16x128xf32>
    %13 = arith.mulf %6, %12 : vector<16x128xf32>
    %cst_9 = arith.constant 0.166666672 : f32
    %14 = vector.broadcast %cst_9 : f32 to vector<16x128xf32>
    %15 = arith.mulf %13, %14 : vector<16x128xf32>
    %cst_10 = arith.constant 0.000000e+00 : f32
    %16 = vector.broadcast %cst_10 : f32 to vector<3x128xf32>
    %c0_11 = arith.constant 0 : index
    %c0_12 = arith.constant 0 : index
    %17 = vector.load %arg9[%c0_11, %c0_12] : memref<22x128xf32, #tpu.memory_space<vmem>>, vector<3x128xf32>
    tpu.vector_store %arg9[%c0_11, %c0_12], %16 {strides = array<i32>} : memref<22x128xf32, #tpu.memory_space<vmem>>, vector<3x128xf32>,
    %cst_13 = arith.constant 0.000000e+00 : f32
    %18 = vector.broadcast %cst_13 : f32 to vector<3x128xf32>
    %c19 = arith.constant 19 : index
    %c0_14 = arith.constant 0 : index
    %19 = vector.load %arg9[%c19, %c0_14] : memref<22x128xf32, #tpu.memory_space<vmem>>, vector<3x128xf32>
    tpu.vector_store %arg9[%c19, %c0_14], %18 {strides = array<i32>} : memref<22x128xf32, #tpu.memory_space<vmem>>, vector<3x128xf32>,
    %c3 = arith.constant 3 : index
    %c0_15 = arith.constant 0 : index
    %20 = vector.load %arg9[%c3, %c0_15] : memref<22x128xf32, #tpu.memory_space<vmem>>, vector<16x128xf32>
    tpu.vector_store %arg9[%c3, %c0_15], %15 {strides = array<i32>} : memref<22x128xf32, #tpu.memory_space<vmem>>, vector<16x128xf32>,
    %cst_16 = arith.constant 0.000000e+00 : f32
    %21 = vector.broadcast %cst_16 : f32 to vector<8x128xf32>
    %c0_17 = arith.constant 0 : index
    %c0_18 = arith.constant 0 : index
    %22 = tpu.strided_load %arg9[%c0_17, %c0_18] {strides = array<i32: 2, 1>} : memref<22x128xf32, #tpu.memory_space<vmem>>, vector<8x128xf32>
    %c0_19 = arith.constant 0 : index
    %c0_20 = arith.constant 0 : index
    %23 = vector.load %arg4[%c0_19, %c0_20] : memref<7x128xf32, #tpu.memory_space<vmem>>, vector<1x128xf32>
    %24 = vector.broadcast %23 : vector<1x128xf32> to vector<8x128xf32>
    %25 = arith.mulf %22, %24 : vector<8x128xf32>
    %26 = arith.addf %21, %25 : vector<8x128xf32>
    %c1 = arith.constant 1 : index
    %c0_21 = arith.constant 0 : index
    %27 = tpu.strided_load %arg9[%c1, %c0_21] {strides = array<i32: 2, 1>} : memref<22x128xf32, #tpu.memory_space<vmem>>, vector<8x128xf32>
    %c1_22 = arith.constant 1 : index
    %c0_23 = arith.constant 0 : index
    %28 = vector.load %arg4[%c1_22, %c0_23] : memref<7x128xf32, #tpu.memory_space<vmem>>, vector<1x128xf32>
    %29 = vector.broadcast %28 : vector<1x128xf32> to vector<8x128xf32>
    %30 = arith.mulf %27, %29 : vector<8x128xf32>
    %31 = arith.addf %26, %30 : vector<8x128xf32>
    %c2 = arith.constant 2 : index
    %c0_24 = arith.constant 0 : index
    %32 = tpu.strided_load %arg9[%c2, %c0_24] {strides = array<i32: 2, 1>} : memref<22x128xf32, #tpu.memory_space<vmem>>, vector<8x128xf32>
    %c2_25 = arith.constant 2 : index
    %c0_26 = arith.constant 0 : index
    %33 = vector.load %arg4[%c2_25, %c0_26] : memref<7x128xf32, #tpu.memory_space<vmem>>, vector<1x128xf32>
    %34 = vector.broadcast %33 : vector<1x128xf32> to vector<8x128xf32>
    %35 = arith.mulf %32, %34 : vector<8x128xf32>
    %36 = arith.addf %31, %35 : vector<8x128xf32>
    %c3_27 = arith.constant 3 : index
    %c0_28 = arith.constant 0 : index
    %37 = tpu.strided_load %arg9[%c3_27, %c0_28] {strides = array<i32: 2, 1>} : memref<22x128xf32, #tpu.memory_space<vmem>>, vector<8x128xf32>
    %c3_29 = arith.constant 3 : index
    %c0_30 = arith.constant 0 : index
    %38 = vector.load %arg4[%c3_29, %c0_30] : memref<7x128xf32, #tpu.memory_space<vmem>>, vector<1x128xf32>
    %39 = vector.broadcast %38 : vector<1x128xf32> to vector<8x128xf32>
    %40 = arith.mulf %37, %39 : vector<8x128xf32>
    %41 = arith.addf %36, %40 : vector<8x128xf32>
    %c4 = arith.constant 4 : index
    %c0_31 = arith.constant 0 : index
    %42 = tpu.strided_load %arg9[%c4, %c0_31] {strides = array<i32: 2, 1>} : memref<22x128xf32, #tpu.memory_space<vmem>>, vector<8x128xf32>
    %c4_32 = arith.constant 4 : index
    %c0_33 = arith.constant 0 : index
    %43 = vector.load %arg4[%c4_32, %c0_33] : memref<7x128xf32, #tpu.memory_space<vmem>>, vector<1x128xf32>
    %44 = vector.broadcast %43 : vector<1x128xf32> to vector<8x128xf32>
    %45 = arith.mulf %42, %44 : vector<8x128xf32>
    %46 = arith.addf %41, %45 : vector<8x128xf32>
    %c5 = arith.constant 5 : index
    %c0_34 = arith.constant 0 : index
    %47 = tpu.strided_load %arg9[%c5, %c0_34] {strides = array<i32: 2, 1>} : memref<22x128xf32, #tpu.memory_space<vmem>>, vector<8x128xf32>
    %c5_35 = arith.constant 5 : index
    %c0_36 = arith.constant 0 : index
    %48 = vector.load %arg4[%c5_35, %c0_36] : memref<7x128xf32, #tpu.memory_space<vmem>>, vector<1x128xf32>
    %49 = vector.broadcast %48 : vector<1x128xf32> to vector<8x128xf32>
    %50 = arith.mulf %47, %49 : vector<8x128xf32>
    %51 = arith.addf %46, %50 : vector<8x128xf32>
    %c6 = arith.constant 6 : index
    %c0_37 = arith.constant 0 : index
    %52 = tpu.strided_load %arg9[%c6, %c0_37] {strides = array<i32: 2, 1>} : memref<22x128xf32, #tpu.memory_space<vmem>>, vector<8x128xf32>
    %c6_38 = arith.constant 6 : index
    %c0_39 = arith.constant 0 : index
    %53 = vector.load %arg4[%c6_38, %c0_39] : memref<7x128xf32, #tpu.memory_space<vmem>>, vector<1x128xf32>
    %54 = vector.broadcast %53 : vector<1x128xf32> to vector<8x128xf32>
    %55 = arith.mulf %52, %54 : vector<8x128xf32>
    %56 = arith.addf %51, %55 : vector<8x128xf32>
    %c0_40 = arith.constant 0 : index
    %c0_41 = arith.constant 0 : index
    %57 = vector.load %arg5[%c0_40, %c0_41] : memref<1x128xf32, #tpu.memory_space<vmem>>, vector<1x128xf32>
    %58 = vector.broadcast %57 : vector<1x128xf32> to vector<8x128xf32>
    %59 = arith.addf %56, %58 : vector<8x128xf32>
    %cst_42 = arith.constant 3.000000e+00 : f32
    %60 = vector.broadcast %cst_42 : f32 to vector<8x128xf32>
    %61 = arith.addf %59, %60 : vector<8x128xf32>
    %cst_43 = arith.constant 0.000000e+00 : f32
    %cst_44 = arith.constant 6.000000e+00 : f32
    %62 = vector.broadcast %cst_43 : f32 to vector<8x128xf32>
    %63 = arith.maximumf %62, %61 : vector<8x128xf32>
    %64 = vector.broadcast %cst_44 : f32 to vector<8x128xf32>
    %65 = arith.minimumf %64, %63 : vector<8x128xf32>
    %66 = arith.mulf %59, %65 : vector<8x128xf32>
    %cst_45 = arith.constant 0.166666672 : f32
    %67 = vector.broadcast %cst_45 : f32 to vector<8x128xf32>
    %68 = arith.mulf %66, %67 : vector<8x128xf32>
    %c0_46 = arith.constant 0 : index
    %c0_47 = arith.constant 0 : index
    %69 = vector.load %arg6[%c0_46, %c0_47] : memref<128x128xf32, #tpu.memory_space<vmem>>, vector<128x128xf32>
    %cst_48 = arith.constant dense<0.000000e+00> : vector<8x128xf32>
    %70 = tpu.matmul %68, %69, %cst_48 {dimension_numbers = #tpu.dot_dimension_numbers<[1], [0], [0], [1], [0, 0, 1, 1], [], []>} : vector<8x128xf32>, vector<128x128xf32>, vector<8x128xf32> -> vector<8x128xf32>
    %c0_49 = arith.constant 0 : index
    %c0_50 = arith.constant 0 : index
    %71 = vector.load %arg7[%c0_49, %c0_50] : memref<1x128xf32, #tpu.memory_space<vmem>>, vector<1x128xf32>
    %72 = vector.broadcast %71 : vector<1x128xf32> to vector<8x128xf32>
    %73 = arith.addf %70, %72 : vector<8x128xf32>
    %c0_51 = arith.constant 0 : index
    %c0_52 = arith.constant 0 : index
    %c0_53 = arith.constant 0 : index
    %74 = vector.load %arg8[%c0_51, %c0_52, %c0_53] : memref<1x8x128xf32, #tpu.memory_space<vmem>>, vector<1x8x128xf32>
    %75 = vector.shape_cast %74 : vector<1x8x128xf32> to vector<8x128xf32>
    %76 = vector.shape_cast %73 : vector<8x128xf32> to vector<1x8x128xf32>
    tpu.vector_store %arg8[%c0_51, %c0_52, %c0_53], %76 {strides = array<i32>} : memref<1x8x128xf32, #tpu.memory_space<vmem>>, vector<1x8x128xf32>,
    return
  }
  func.func @transform_0(%arg0: i32) -> (i32, i32, i32) {
    %c0_i32 = arith.constant 0 : i32
    %c0_i32_0 = arith.constant 0 : i32
    %c0_i32_1 = arith.constant 0 : i32
    return %arg0, %c0_i32, %c0_i32_0 : i32, i32, i32
  }
  func.func @transform_1(%arg0: i32) -> (i32, i32) {
    %c0_i32 = arith.constant 0 : i32
    %c0_i32_0 = arith.constant 0 : i32
    %c0_i32_1 = arith.constant 0 : i32
    return %c0_i32, %c0_i32_0 : i32, i32
  }
  func.func @transform_2(%arg0: i32) -> (i32, i32) {
    %c0_i32 = arith.constant 0 : i32
    %c0_i32_0 = arith.constant 0 : i32
    %c0_i32_1 = arith.constant 0 : i32
    return %c0_i32, %c0_i32_0 : i32, i32
  }
  func.func @transform_3(%arg0: i32) -> (i32, i32) {
    %c0_i32 = arith.constant 0 : i32
    %c0_i32_0 = arith.constant 0 : i32
    %c0_i32_1 = arith.constant 0 : i32
    return %c0_i32, %c0_i32_0 : i32, i32
  }
  func.func @transform_4(%arg0: i32) -> (i32, i32) {
    %c0_i32 = arith.constant 0 : i32
    %c0_i32_0 = arith.constant 0 : i32
    %c0_i32_1 = arith.constant 0 : i32
    return %c0_i32, %c0_i32_0 : i32, i32
  }
  func.func @transform_5(%arg0: i32) -> (i32, i32) {
    %c0_i32 = arith.constant 0 : i32
    %c0_i32_0 = arith.constant 0 : i32
    %c0_i32_1 = arith.constant 0 : i32
    return %c0_i32, %c0_i32_0 : i32, i32
  }
  func.func @transform_6(%arg0: i32) -> (i32, i32) {
    %c0_i32 = arith.constant 0 : i32
    %c0_i32_0 = arith.constant 0 : i32
    %c0_i32_1 = arith.constant 0 : i32
    return %c0_i32, %c0_i32_0 : i32, i32
  }
  func.func @transform_7(%arg0: i32) -> (i32, i32, i32) {
    %c0_i32 = arith.constant 0 : i32
    %c0_i32_0 = arith.constant 0 : i32
    %c0_i32_1 = arith.constant 0 : i32
    return %arg0, %c0_i32, %c0_i32_0 : i32, i32, i32
  }
}

</mosaic_0001>

<llo_original>
// kernel: tpu_custom_call.1
$region0: #{tpu_custom_call.1}
  #allocation0 [shape = 'u32[]', space=smem, size = 0x4, offset = 0x4, fixed_abs, tag = 'smem constant byte address 0x4 - core index']
  #allocation1 [shape = 'u32[144,128]{1,0:T(1,128)}', space=vmem, size = 0x12000, scoped, tag = 'internal scratch']
  #allocation2 [shape = 'f32[22,128]{1,0:T(8,128)}', space=vmem, size = 0x3000, scoped, tag = 'scratch operand']
  %s0 = inlined_call_operand.vmem [shape: f32[2,16,4], index: 0, kind: input, shape index: {}]
  %s1 = inlined_call_operand.vmem [shape: f32[4,128], index: 1, kind: input, shape index: {}]
  %s2 = inlined_call_operand.vmem [shape: f32[1,128], index: 2, kind: input, shape index: {}]
  %s3 = inlined_call_operand.vmem [shape: f32[7,128], index: 3, kind: input, shape index: {}]
  %s4 = inlined_call_operand.vmem [shape: f32[1,128], index: 4, kind: input, shape index: {}]
  %s5 = inlined_call_operand.hbm [shape: f32[128,128], index: 5, kind: input, shape index: {}]
  %s6 = inlined_call_operand.vmem [shape: f32[1,128], index: 6, kind: input, shape index: {}]
  %s7 = inlined_call_operand.hbm [shape: f32[2,8,128], index: 7, kind: output, shape index: {}]
  %s8 = sld [smem:[#allocation0]]
  $region65: #{tpu_custom_call.1} parent=0
    _
  %s10 = ssub.s32 1, %s8
  %s11 = scalar_select 0, %s10, %s8
  $region1: #{tpu_custom_call.1} parent=0
    #allocation3 [shape = 'u8[65536]{0}', space=vmem, size = 0x10000, scoped, tag = 'input window, operand 5, single buffered']
    #allocation4 [shape = 's32[2]{0}', space=sflag, size = 0x8, scoped, tag = 'scoped memory for tpu_custom_call.1']
    #allocation5 [shape = 's32[2]{0}', space=sflag, size = 0x8, scoped, tag = 'scoped memory for tpu_custom_call.1']
    #allocation6 [shape = 'u8[8192]{0}', space=vmem, size = 0x2000, scoped, tag = 'output window, operand 0']
    %12 = vsyncpa [#allocation4], 0
    %13 = vsyncpa [#allocation5], 0
    %s14 = scalar_lea.sflag [#allocation5], 1
    %15 = vsyncpa %s14, 0
    loop: start=0, step=1, limit=4
    $region2: #{tpu_custom_call.1} parent=1 // loop_pre_header
      _
    $region3: #{tpu_custom_call.1} parent=1 // loop_header
      %s17 = sphi 0, %s21
      %p18 = scmp.ge.s32.totalorder %s17, 4
      %s27 = sphi 0, %s29
      %s30 = sphi 0, %s27
      %s31 = sphi 0, %s30
      %s47 = sphi 0, %s31
      %s51 = sphi 0, %s51
      %s53 = sphi 0, %s51
      %s54 = sphi 0, %s53
      %s68 = sphi 0, %s54
      %s72 = sphi 0, %s72
      %s74 = sphi 0, %s72
      %s75 = sphi 0, %s74
      %s89 = sphi 0, %s75
      %s93 = sphi 0, %s93
      %s95 = sphi 0, %s93
      %s96 = sphi 0, %s95
      %s110 = sphi 0, %s96
      %s114 = sphi 0, %s114
      %s116 = sphi 0, %s114
      %s117 = sphi 0, %s116
      %s131 = sphi 0, %s117
      %s135 = sphi 0, %s135
      %s137 = sphi 0, %s135
      %s138 = sphi 0, %s137
      %s152 = sphi 0, %s138
      %s156 = sphi 0, %s156
      %s158 = sphi 0, %s156
      %s159 = sphi 0, %s158
      %s173 = sphi 0, %s159
      %s179 = sphi 0, %s181
      %s182 = sphi 0, %s179
      %s183 = sphi 0, %s182
      %s199 = sphi 0, %s183
    $region4: #{tpu_custom_call.1} parent=1 // loop_header_branch
      %20 = sbr.rel (%p18) target = $region8
    $region5: #{tpu_custom_call.1} parent=1 // loop_body
      %s22 = ssub.s32 %s17, 1
      %s23 = ssub.s32 %s17, 2
      %s24 = sadd.s32 %s17, 1
      %s25 = ssub.s32 %s17, %s24
      %p26 = scmp.eq.s32.totalorder %s25, 0
      %s28 = sadd.s32 %s27, 1
      %s29 = scalar_select %p26, %s27, %s28
      %p32 = pneg %p26
      %p33 = scmp.eq.s32.totalorder %s17, 1
      %p34 = por %p32, %p33
      %p35 = scmp.ne.s32.totalorder %s27, %s30
      %p36 = scmp.eq.s32.totalorder %s17, 0
      %p37 = por %p35, %p36
      %p38 = scmp.ne.s32.totalorder %s27, %s30
      %p39 = scmp.eq.s32.totalorder %s22, 1
      %p40 = por %p38, %p39
      %p41 = scmp.ne.s32.totalorder %s30, %s31
      %p42 = scmp.eq.s32.totalorder %s22, 0
      %p43 = por %p41, %p42
      %p44 = scmp.ne.s32.totalorder %s30, %s31
      %p45 = scmp.eq.s32.totalorder %s23, 1
      %p46 = por %p44, %p45
      %p48 = scmp.ne.s32.totalorder %s31, %s47
      %p49 = scmp.eq.s32.totalorder %s23, 0
      %p50 = por %p48, %p49
      %s52 = sadd.s32 %s51, 1
      %p55 = scmp.eq.s32.totalorder %s17, 1
      %p56 = scmp.ne.s32.totalorder %s51, %s53
      %p57 = scmp.eq.s32.totalorder %s17, 0
      %p58 = por %p56, %p57
      %p59 = scmp.ne.s32.totalorder %s51, %s53
      %p60 = scmp.eq.s32.totalorder %s22, 1
      %p61 = por %p59, %p60
      %p62 = scmp.ne.s32.totalorder %s53, %s54
      %p63 = scmp.eq.s32.totalorder %s22, 0
      %p64 = por %p62, %p63
      %p65 = scmp.ne.s32.totalorder %s53, %s54
      %p66 = scmp.eq.s32.totalorder %s23, 1
      %p67 = por %p65, %p66
      %p69 = scmp.ne.s32.totalorder %s54, %s68
      %p70 = scmp.eq.s32.totalorder %s23, 0
      %p71 = por %p69, %p70
      %s73 = sadd.s32 %s72, 1
      %p76 = scmp.eq.s32.totalorder %s17, 1
      %p77 = scmp.ne.s32.totalorder %s72, %s74
      %p78 = scmp.eq.s32.totalorder %s17, 0
      %p79 = por %p77, %p78
      %p80 = scmp.ne.s32.totalorder %s72, %s74
      %p81 = scmp.eq.s32.totalorder %s22, 1
      %p82 = por %p80, %p81
      %p83 = scmp.ne.s32.totalorder %s74, %s75
      %p84 = scmp.eq.s32.totalorder %s22, 0
      %p85 = por %p83, %p84
      %p86 = scmp.ne.s32.totalorder %s74, %s75
      %p87 = scmp.eq.s32.totalorder %s23, 1
      %p88 = por %p86, %p87
      %p90 = scmp.ne.s32.totalorder %s75, %s89
      %p91 = scmp.eq.s32.totalorder %s23, 0
      %p92 = por %p90, %p91
      %s94 = sadd.s32 %s93, 1
      %p97 = scmp.eq.s32.totalorder %s17, 1
      %p98 = scmp.ne.s32.totalorder %s93, %s95
      %p99 = scmp.eq.s32.totalorder %s17, 0
      %p100 = por %p98, %p99
      %p101 = scmp.ne.s32.totalorder %s93, %s95
      %p102 = scmp.eq.s32.totalorder %s22, 1
      %p103 = por %p101, %p102
      %p104 = scmp.ne.s32.totalorder %s95, %s96
      %p105 = scmp.eq.s32.totalorder %s22, 0
      %p106 = por %p104, %p105
      %p107 = scmp.ne.s32.totalorder %s95, %s96
      %p108 = scmp.eq.s32.totalorder %s23, 1
      %p109 = por %p107, %p108
      %p111 = scmp.ne.s32.totalorder %s96, %s110
      %p112 = scmp.eq.s32.totalorder %s23, 0
      %p113 = por %p111, %p112
      %s115 = sadd.s32 %s114, 1
      %p118 = scmp.eq.s32.totalorder %s17, 1
      %p119 = scmp.ne.s32.totalorder %s114, %s116
      %p120 = scmp.eq.s32.totalorder %s17, 0
      %p121 = por %p119, %p120
      %p122 = scmp.ne.s32.totalorder %s114, %s116
      %p123 = scmp.eq.s32.totalorder %s22, 1
      %p124 = por %p122, %p123
      %p125 = scmp.ne.s32.totalorder %s116, %s117
      %p126 = scmp.eq.s32.totalorder %s22, 0
      %p127 = por %p125, %p126
      %p128 = scmp.ne.s32.totalorder %s116, %s117
      %p129 = scmp.eq.s32.totalorder %s23, 1
      %p130 = por %p128, %p129
      %p132 = scmp.ne.s32.totalorder %s117, %s131
      %p133 = scmp.eq.s32.totalorder %s23, 0
      %p134 = por %p132, %p133
      %s136 = sadd.s32 %s135, 1
      %p139 = scmp.eq.s32.totalorder %s17, 1
      %p140 = scmp.ne.s32.totalorder %s135, %s137
      %p141 = scmp.eq.s32.totalorder %s17, 0
      %p142 = por %p140, %p141
      %p143 = scmp.ne.s32.totalorder %s135, %s137
      %p144 = scmp.eq.s32.totalorder %s22, 1
      %p145 = por %p143, %p144
      %p146 = scmp.ne.s32.totalorder %s137, %s138
      %p147 = scmp.eq.s32.totalorder %s22, 0
      %p148 = por %p146, %p147
      %p149 = scmp.ne.s32.totalorder %s137, %s138
      %p150 = scmp.eq.s32.totalorder %s23, 1
      %p151 = por %p149, %p150
      %p153 = scmp.ne.s32.totalorder %s138, %s152
      %p154 = scmp.eq.s32.totalorder %s23, 0
      %p155 = por %p153, %p154
      %s157 = sadd.s32 %s156, 1
      %p160 = scmp.eq.s32.totalorder %s17, 1
      %p161 = scmp.ne.s32.totalorder %s156, %s158
      %p162 = scmp.eq.s32.totalorder %s17, 0
      %p163 = por %p161, %p162
      %p164 = scmp.ne.s32.totalorder %s156, %s158
      %p165 = scmp.eq.s32.totalorder %s22, 1
      %p166 = por %p164, %p165
      %p167 = scmp.ne.s32.totalorder %s158, %s159
      %p168 = scmp.eq.s32.totalorder %s22, 0
      %p169 = por %p167, %p168
      %p170 = scmp.ne.s32.totalorder %s158, %s159
      %p171 = scmp.eq.s32.totalorder %s23, 1
      %p172 = por %p170, %p171
      %p174 = scmp.ne.s32.totalorder %s159, %s173
      %p175 = scmp.eq.s32.totalorder %s23, 0
      %p176 = por %p174, %p175
      %s177 = ssub.s32 %s17, %s24
      %p178 = scmp.eq.s32.totalorder %s177, 0
      %s180 = sadd.s32 %s179, 1
      %s181 = scalar_select %p178, %s179, %s180
      %p184 = pneg %p178
      %p185 = scmp.eq.s32.totalorder %s17, 1
      %p186 = por %p184, %p185
      %p187 = scmp.ne.s32.totalorder %s179, %s182
      %p188 = scmp.eq.s32.totalorder %s17, 0
      %p189 = por %p187, %p188
      %p190 = scmp.ne.s32.totalorder %s179, %s182
      %p191 = scmp.eq.s32.totalorder %s22, 1
      %p192 = por %p190, %p191
      %p193 = scmp.ne.s32.totalorder %s182, %s183
      %p194 = scmp.eq.s32.totalorder %s22, 0
      %p195 = por %p193, %p194
      %p196 = scmp.ne.s32.totalorder %s182, %s183
      %p197 = scmp.eq.s32.totalorder %s23, 1
      %p198 = por %p196, %p197
      %p200 = scmp.ne.s32.totalorder %s183, %s199
      %p201 = scmp.eq.s32.totalorder %s23, 0
      %p202 = por %p200, %p201
      %p203 = scmp.le.s32.totalorder 1, %s17
      %p204 = scmp.lt.s32.totalorder %s17, 3
      %p205 = pnand %p203, %p204
      %p206 = pneg %p205
      // Predicated region
      $region9: #{tpu_custom_call.1} parent=5 // pred_check
        _
      $region10: #{tpu_custom_call.1} parent=5 // pred_check_branch
        %208 = sbr.rel (%p205) target = $region12
      $region11: #{tpu_custom_call.1} parent=5 // pred_region
        %s209 = ssub.s32 %s17, 1
        // Predicated region
        $region13: #{tpu_custom_call.1} parent=11 // pred_check
          %p210 = pneg %p64
        $region14: #{tpu_custom_call.1} parent=11 // pred_check_branch
          %212 = sbr.rel (%p210) target = $region16
        $region15: #{tpu_custom_call.1} parent=11 // pred_region
          _
        $region16: #{tpu_custom_call.1} parent=11 // pred_fallthru
          _
        // Predicated region
        $region17: #{tpu_custom_call.1} parent=11 // pred_check
          %p213 = pneg %p85
        $region18: #{tpu_custom_call.1} parent=11 // pred_check_branch
          %215 = sbr.rel (%p213) target = $region20
        $region19: #{tpu_custom_call.1} parent=11 // pred_region
          _
        $region20: #{tpu_custom_call.1} parent=11 // pred_fallthru
          _
        // Predicated region
        $region21: #{tpu_custom_call.1} parent=11 // pred_check
          %p216 = pneg %p106
        $region22: #{tpu_custom_call.1} parent=11 // pred_check_branch
          %218 = sbr.rel (%p216) target = $region24
        $region23: #{tpu_custom_call.1} parent=11 // pred_region
          _
        $region24: #{tpu_custom_call.1} parent=11 // pred_fallthru
          _
        // Predicated region
        $region25: #{tpu_custom_call.1} parent=11 // pred_check
          %p219 = pneg %p127
        $region26: #{tpu_custom_call.1} parent=11 // pred_check_branch
          %221 = sbr.rel (%p219) target = $region28
        $region27: #{tpu_custom_call.1} parent=11 // pred_region
          _
        $region28: #{tpu_custom_call.1} parent=11 // pred_fallthru
          _
        // Predicated region
        $region29: #{tpu_custom_call.1} parent=11 // pred_check
          %p222 = pneg %p148
        $region30: #{tpu_custom_call.1} parent=11 // pred_check_branch
          %224 = sbr.rel (%p222) target = $region32
        $region31: #{tpu_custom_call.1} parent=11 // pred_region
          %s226 = ssub.s32 2048, 2048
          %227 = vsyncadd [#allocation4], %s226
          %s228 = sshll.u32 [#allocation3], 4
          %s229 = int_to_ptr.vmem [resolvable:$true] %s228
          %234 = dma.hbm_to_vmem [thread:$0]  %s5, 2048, %s229, [#allocation4], 128, 128, 8
        $region32: #{tpu_custom_call.1} parent=11 // pred_fallthru
          _
        // Predicated region
        $region33: #{tpu_custom_call.1} parent=11 // pred_check
          %p235 = pneg %p169
        $region34: #{tpu_custom_call.1} parent=11 // pred_check_branch
          %237 = sbr.rel (%p235) target = $region36
        $region35: #{tpu_custom_call.1} parent=11 // pred_region
          _
        $region36: #{tpu_custom_call.1} parent=11 // pred_fallthru
          _
      $region12: #{tpu_custom_call.1} parent=5 // pred_fallthru
        _
      %p238 = scmp.lt.s32.totalorder %s17, 2
      // Predicated region
      $region37: #{tpu_custom_call.1} parent=5 // pred_check
        %p239 = pneg %p238
      $region38: #{tpu_custom_call.1} parent=5 // pred_check_branch
        %241 = sbr.rel (%p239) target = $region40
      $region39: #{tpu_custom_call.1} parent=5 // pred_region
        // Predicated region
        $region41: #{tpu_custom_call.1} parent=39 // pred_check
          %p242 = pneg %p37
        $region42: #{tpu_custom_call.1} parent=39 // pred_check_branch
          %244 = sbr.rel (%p242) target = $region44
        $region43: #{tpu_custom_call.1} parent=39 // pred_region
          %p245 = scmp.lt.s32.totalorder %s17, 1
          %s246 = scalar_select %p245, %s17, 1
          %s247 = smul.addr %s246, 2
          %s248 = smul.addr %s247, 8
          %s249 = scalar_lea.vmem %s0, %s248
        $region44: #{tpu_custom_call.1} parent=39 // pred_fallthru
          _
      $region40: #{tpu_custom_call.1} parent=5 // pred_fallthru
        _
      %p250 = scmp.le.s32.totalorder 1, %s17
      %p251 = scmp.lt.s32.totalorder %s17, 3
      %p252 = pnand %p250, %p251
      %p253 = pneg %p252
      // Predicated region
      $region45: #{tpu_custom_call.1} parent=5 // pred_check
        _
      $region46: #{tpu_custom_call.1} parent=5 // pred_check_branch
        %255 = sbr.rel (%p252) target = $region48
      $region47: #{tpu_custom_call.1} parent=5 // pred_region
        %s256 = ssub.s32 %s17, 1
        // Predicated region
        $region49: #{tpu_custom_call.1} parent=47 // pred_check
          %p257 = pneg %p148
        $region50: #{tpu_custom_call.1} parent=47 // pred_check_branch
          %259 = sbr.rel (%p257) target = $region52
        $region51: #{tpu_custom_call.1} parent=47 // pred_region
          %260 = dma.done [#allocation4], 2048
        $region52: #{tpu_custom_call.1} parent=47 // pred_fallthru
          _
        %p261 = scmp.lt.s32.totalorder %s22, 1
        %s262 = scalar_select %p261, %s22, 1
        %s263 = smul.addr %s262, 2
        %s264 = smul.addr %s263, 8
        %s265 = scalar_lea.vmem %s0, %s264
        %p266 = pneg %p43
        %p267 = pneg %p40
        %p268 = pneg %p64
        %p269 = pneg %p61
        %p270 = pneg %p85
        %p271 = pneg %p82
        %p272 = pneg %p106
        %p273 = pneg %p103
        %p274 = pneg %p127
        %p275 = pneg %p124
        %p276 = pneg %p148
        %p277 = pneg %p145
        %p278 = pneg %p169
        %p279 = pneg %p166
        %p280 = pneg %p195
        %p281 = pneg %p192
        %s282 = sand.u32 %s182, 1
        %s283 = scalar_lea.sflag [#allocation5], %s282
        %s284 = sand.u32 %s182, 1
        %s285 = smul.addr %s284, 8
        %s286 = scalar_lea.vmem [#allocation6], %s285
        %p287 = scmp.lt.s32.totalorder %s22, 1
        %s288 = scalar_select %p287, %s22, 1
        %s289 = smul.addr %s288, 2
        %s290 = smul.addr %s289, 8
        %s291 = scalar_lea.vmem %s0, %s290
        %v292 = vld [vmem:[%s291] sm:$0xff]
        %v293 = vld [vmem:[%s291 + $0x8] sm:$0xff]
        %v294 = vld [vmem:[%s1] sm:$0xf]
        %v295 = vld [vmem:[%s2] sm:$0x1]
        %v297 = vlaneseq
        %v298 = vshrl.u32 %v297, 7
        %v299 = vsub.s32 0, %v298
        %v300 = vrot.slane %v295, %v299
        %vm302 = vcmask 31744
        %v304 = vsel %vm302, %v292, 0
        %v307 = vsel %vm302, %v293, 0
        %vm309 = vcmask 1043456
        %v311 = vsel %vm309, %v294, 0
        %313 = vmatprep.subr.mxu0 0.0
        %314 = vmatpush1.msra.mxu0 %v311
        %315 = vmatprep.subr.mxu0 0.0
        %316 = vmatpush1.msra.mxu0 0.0
        %317 = vmatprep.subr.mxu0 0.0
        %318 = vmatpush1.msra.mxu0 0.0
        %319 = vmatprep.subr.mxu0 0.0
        %320 = vmatpush1.msra.mxu0 0.0
        %321 = vmatprep.subr.mxu0 0.0
        %322 = vmatpush1.msra.mxu0 0.0
        %323 = vmatprep.subr.mxu0 0.0
        %324 = vmatpush1.msra.mxu0 0.0
        %325 = vmatprep.subr.mxu0 0.0
        %326 = vmatpush1.msra.mxu0 0.0
        %327 = vmatprep.subr.mxu0 0.0
        %328 = vmatpush1.msra.mxu0 0.0
        %329 = vmatprep.subr.mxu0 0.0
        %330 = vmatpush1.msra.mxu0 0.0
        %331 = vmatprep.subr.mxu0 0.0
        %332 = vmatpush1.msra.mxu0 0.0
        %333 = vmatprep.subr.mxu0 0.0
        %334 = vmatpush1.msra.mxu0 0.0
        %335 = vmatprep.subr.mxu0 0.0
        %336 = vmatpush1.msra.mxu0 0.0
        %337 = vmatprep.subr.mxu0 0.0
        %338 = vmatpush1.msra.mxu0 0.0
        %339 = vmatprep.subr.mxu0 0.0
        %340 = vmatpush1.msra.mxu0 0.0
        %341 = vmatprep.subr.mxu0 0.0
        %342 = vmatpush1.msra.mxu0 0.0
        %343 = vmatprep.subr.mxu0 0.0
        %344 = vmatpush1.msra.mxu0 0.0
        %345 = vmatprep.subr.mxu0 0.0
        %346 = vmatpush1.msra.mxu0 0.0
        %347 = vmatprep.subr.mxu0 0.0
        %348 = vmatpush1.msra.mxu0 0.0
        %349 = vmatprep.subr.mxu0 0.0
        %350 = vmatpush1.msra.mxu0 0.0
        %351 = vmatprep.subr.mxu0 0.0
        %352 = vmatpush1.msra.mxu0 0.0
        %353 = vmatprep.subr.mxu0 0.0
        %354 = vmatpush1.msra.mxu0 0.0
        %355 = vmatprep.subr.mxu0 0.0
        %356 = vmatpush1.msra.mxu0 0.0
        %357 = vmatprep.subr.mxu0 0.0
        %358 = vmatpush1.msra.mxu0 0.0
        %359 = vmatprep.subr.mxu0 0.0
        %360 = vmatpush1.msra.mxu0 0.0
        %361 = vmatprep.subr.mxu0 0.0
        %362 = vmatpush1.msra.mxu0 0.0
        %363 = vmatprep.subr.mxu0 0.0
        %364 = vmatpush1.msra.mxu0 0.0
        %365 = vmatprep.subr.mxu0 0.0
        %366 = vmatpush1.msra.mxu0 0.0
        %367 = vmatprep.subr.mxu0 0.0
        %368 = vmatpush1.msra.mxu0 0.0
        %369 = vmatprep.subr.mxu0 0.0
        %370 = vmatpush1.msra.mxu0 0.0
        %371 = vmatprep.subr.mxu0 0.0
        %372 = vmatpush1.msra.mxu0 0.0
        %373 = vmatprep.subr.mxu0 0.0
        %374 = vmatpush1.msra.mxu0 0.0
        %375 = vmatprep.subr.mxu0 0.0
        %376 = vmatpush1.msra.mxu0 0.0
        %377 = vmatprep.mubr.f32.mxu0 0.0
        %378 = vmatmul.mubr.f32.gmra.mrb[0].mxu0 %v304
        %v379 = vpop.f32.mrb[0].mxu0
        %v380 = vadd.f32 %v300, %v379
        %v381 = vpop.f32.mrb[0].mxu0
        %382 = vmatprep.mubr.f32.mxu0 0.0
        %383 = vmatmul.mubr.f32.gmra.mrb[0].mxu0 %v307
        %v384 = vpop.f32.mrb[0].mxu0
        %v385 = vadd.f32 %v300, %v384
        %v386 = vpop.f32.mrb[0].mxu0
        %387 = vdwg.mxu0
        %v388 = vadd.f32 %v380, 3.0
        %v389 = vadd.f32 %v385, 3.0
        %v390 = vmax.f32 %v388, 0.0
        %v391 = vmax.f32 %v389, 0.0
        %v392 = vmin.f32 %v390, 6.0
        %v393 = vmin.f32 %v391, 6.0
        %v394 = vmul.f32 %v380, %v392
        %v395 = vmul.f32 %v385, %v393
        %v396 = vmul.f32 %v394, 0.16666667
        %v397 = vmul.f32 %v395, 0.16666667
        %398 = vst [vmem:[#allocation2] sm:$0x7] 0.0
        %399 = vst [vmem:[#allocation2 + $0x13] sm:$0x7] 0.0
        %400 = vst [vmem:[#allocation2 + $0x3] sm:$0xff] %v396
        %401 = vst [vmem:[#allocation2 + $0xb] sm:$0xff] %v397
        %v402 = vld [vmem:[#allocation2] ss:$2 sm:$0xff]
        %v403 = vld [vmem:[%s3] sm:$0x1]
        %v404 = vlaneseq
        %v405 = vshrl.u32 %v404, 7
        %v406 = vsub.s32 0, %v405
        %v407 = vrot.slane %v403, %v406
        %v408 = vmul.f32 %v402, %v407
        %v409 = vadd.f32 %v408, 0.0
        %s410 = scalar_lea.vmem [#allocation2], 1
        %v411 = vld [vmem:[%s410] ss:$2 sm:$0xff]
        %v412 = vld [vmem:[%s3 + $0x1] sm:$0x1]
        %v413 = vlaneseq
        %v414 = vshrl.u32 %v413, 7
        %v415 = vsub.s32 0, %v414
        %v416 = vrot.slane %v412, %v415
        %v417 = vmul.f32 %v411, %v416
        %v418 = vadd.f32 %v409, %v417
        %s419 = scalar_lea.vmem [#allocation2], 2
        %v420 = vld [vmem:[%s419] ss:$2 sm:$0xff]
        %v421 = vld [vmem:[%s3 + $0x2] sm:$0x1]
        %v422 = vlaneseq
        %v423 = vshrl.u32 %v422, 7
        %v424 = vsub.s32 0, %v423
        %v425 = vrot.slane %v421, %v424
        %v426 = vmul.f32 %v420, %v425
        %v427 = vadd.f32 %v418, %v426
        %s428 = scalar_lea.vmem [#allocation2], 3
        %v429 = vld [vmem:[%s428] ss:$2 sm:$0xff]
        %v430 = vld [vmem:[%s3 + $0x3] sm:$0x1]
        %v431 = vlaneseq
        %v432 = vshrl.u32 %v431, 7
        %v433 = vsub.s32 0, %v432
        %v434 = vrot.slane %v430, %v433
        %v435 = vmul.f32 %v429, %v434
        %v436 = vadd.f32 %v427, %v435
        %s437 = scalar_lea.vmem [#allocation2], 4
        %v438 = vld [vmem:[%s437] ss:$2 sm:$0xff]
        %v439 = vld [vmem:[%s3 + $0x4] sm:$0x1]
        %v440 = vlaneseq
        %v441 = vshrl.u32 %v440, 7
        %v442 = vsub.s32 0, %v441
        %v443 = vrot.slane %v439, %v442
        %v444 = vmul.f32 %v438, %v443
        %v445 = vadd.f32 %v436, %v444
        %s446 = scalar_lea.vmem [#allocation2], 5
        %v447 = vld [vmem:[%s446] ss:$2 sm:$0xff]
        %v448 = vld [vmem:[%s3 + $0x5] sm:$0x1]
        %v449 = vlaneseq
        %v450 = vshrl.u32 %v449, 7
        %v451 = vsub.s32 0, %v450
        %v452 = vrot.slane %v448, %v451
        %v453 = vmul.f32 %v447, %v452
        %v454 = vadd.f32 %v445, %v453
        %s455 = scalar_lea.vmem [#allocation2], 6
        %v456 = vld [vmem:[%s455] ss:$2 sm:$0xff]
        %v457 = vld [vmem:[%s3 + $0x6] sm:$0x1]
        %v458 = vlaneseq
        %v459 = vshrl.u32 %v458, 7
        %v460 = vsub.s32 0, %v459
        %v461 = vrot.slane %v457, %v460
        %v462 = vmul.f32 %v456, %v461
        %v463 = vadd.f32 %v454, %v462
        %v464 = vld [vmem:[%s4] sm:$0x1]
        %v466 = vlaneseq
        %v467 = vshrl.u32 %v466, 7
        %v468 = vsub.s32 0, %v467
        %v469 = vrot.slane %v464, %v468
        %v471 = vadd.f32 %v463, %v469
        %v472 = vadd.f32 %v471, 3.0
        %v473 = vmax.f32 %v472, 0.0
        %v474 = vmin.f32 %v473, 6.0
        %v475 = vmul.f32 %v471, %v474
        %v476 = vmul.f32 %v475, 0.16666667
        %v477 = vld [vmem:[#allocation3] sm:$0xff]
        %v478 = vld [vmem:[#allocation3 + $0x8] sm:$0xff]
        %v479 = vld [vmem:[#allocation3 + $0x10] sm:$0xff]
        %v480 = vld [vmem:[#allocation3 + $0x18] sm:$0xff]
        %v481 = vld [vmem:[#allocation3 + $0x20] sm:$0xff]
        %v482 = vld [vmem:[#allocation3 + $0x28] sm:$0xff]
        %v483 = vld [vmem:[#allocation3 + $0x30] sm:$0xff]
        %v484 = vld [vmem:[#allocation3 + $0x38] sm:$0xff]
        %v485 = vld [vmem:[#allocation3 + $0x40] sm:$0xff]
        %v486 = vld [vmem:[#allocation3 + $0x48] sm:$0xff]
        %v487 = vld [vmem:[#allocation3 + $0x50] sm:$0xff]
        %v488 = vld [vmem:[#allocation3 + $0x58] sm:$0xff]
        %v489 = vld [vmem:[#allocation3 + $0x60] sm:$0xff]
        %v490 = vld [vmem:[#allocation3 + $0x68] sm:$0xff]
        %v491 = vld [vmem:[#allocation3 + $0x70] sm:$0xff]
        %v492 = vld [vmem:[#allocation3 + $0x78] sm:$0xff]
        %v493 = vld [vmem:[%s6] sm:$0x1]
        %v495 = vlaneseq
        %v496 = vshrl.u32 %v495, 7
        %v497 = vsub.s32 0, %v496
        %v498 = vrot.slane %v493, %v497
        %500 = vmatprep.subr.mxu0 0.0
        %501 = vmatpush1.msra.mxu0 %v477
        %502 = vmatprep.subr.mxu0 0.0
        %503 = vmatpush1.msra.mxu0 %v478
        %504 = vmatprep.subr.mxu0 0.0
        %505 = vmatpush1.msra.mxu0 %v479
        %506 = vmatprep.subr.mxu0 0.0
        %507 = vmatpush1.msra.mxu0 %v480
        %508 = vmatprep.subr.mxu0 0.0
        %509 = vmatpush1.msra.mxu0 %v481
        %510 = vmatprep.subr.mxu0 0.0
        %511 = vmatpush1.msra.mxu0 %v482
        %512 = vmatprep.subr.mxu0 0.0
        %513 = vmatpush1.msra.mxu0 %v483
        %514 = vmatprep.subr.mxu0 0.0
        %515 = vmatpush1.msra.mxu0 %v484
        %516 = vmatprep.subr.mxu0 0.0
        %517 = vmatpush1.msra.mxu0 %v485
        %518 = vmatprep.subr.mxu0 0.0
        %519 = vmatpush1.msra.mxu0 %v486
        %520 = vmatprep.subr.mxu0 0.0
        %521 = vmatpush1.msra.mxu0 %v487
        %522 = vmatprep.subr.mxu0 0.0
        %523 = vmatpush1.msra.mxu0 %v488
        %524 = vmatprep.subr.mxu0 0.0
        %525 = vmatpush1.msra.mxu0 %v489
        %526 = vmatprep.subr.mxu0 0.0
        %527 = vmatpush1.msra.mxu0 %v490
        %528 = vmatprep.subr.mxu0 0.0
        %529 = vmatpush1.msra.mxu0 %v491
        %530 = vmatprep.subr.mxu0 0.0
        %531 = vmatpush1.msra.mxu0 %v492
        %532 = vmatprep.subr.mxu0 0.0
        %533 = vmatpush1.msra.mxu0 0.0
        %534 = vmatprep.subr.mxu0 0.0
        %535 = vmatpush1.msra.mxu0 0.0
        %536 = vmatprep.subr.mxu0 0.0
        %537 = vmatpush1.msra.mxu0 0.0
        %538 = vmatprep.subr.mxu0 0.0
        %539 = vmatpush1.msra.mxu0 0.0
        %540 = vmatprep.subr.mxu0 0.0
        %541 = vmatpush1.msra.mxu0 0.0
        %542 = vmatprep.subr.mxu0 0.0
        %543 = vmatpush1.msra.mxu0 0.0
        %544 = vmatprep.subr.mxu0 0.0
        %545 = vmatpush1.msra.mxu0 0.0
        %546 = vmatprep.subr.mxu0 0.0
        %547 = vmatpush1.msra.mxu0 0.0
        %548 = vmatprep.subr.mxu0 0.0
        %549 = vmatpush1.msra.mxu0 0.0
        %550 = vmatprep.subr.mxu0 0.0
        %551 = vmatpush1.msra.mxu0 0.0
        %552 = vmatprep.subr.mxu0 0.0
        %553 = vmatpush1.msra.mxu0 0.0
        %554 = vmatprep.subr.mxu0 0.0
        %555 = vmatpush1.msra.mxu0 0.0
        %556 = vmatprep.subr.mxu0 0.0
        %557 = vmatpush1.msra.mxu0 0.0
        %558 = vmatprep.subr.mxu0 0.0
        %559 = vmatpush1.msra.mxu0 0.0
        %560 = vmatprep.subr.mxu0 0.0
        %561 = vmatpush1.msra.mxu0 0.0
        %562 = vmatprep.subr.mxu0 0.0
        %563 = vmatpush1.msra.mxu0 0.0
        %564 = vmatprep.mubr.f32.mxu0 0.0
        %565 = vmatmul.mubr.f32.gmra.mrb[0].mxu0 %v476
        %v566 = vpop.f32.mrb[0].mxu0
        %v567 = vadd.f32 %v498, %v566
        %v568 = vpop.f32.mrb[0].mxu0
        %569 = vdwg.mxu0
        %570 = vst [vmem:[%s286] sm:$0xff] %v567
        %s571 = sand.u32 %s182, 1
        %s572 = scalar_lea.sflag [#allocation5], %s571
        %s573 = sand.u32 %s182, 1
        %s574 = smul.addr %s573, 8
        %s575 = scalar_lea.vmem [#allocation6], %s574
        // Predicated region
        $region53: #{tpu_custom_call.1} parent=47 // pred_check
          %p576 = pneg %p192
        $region54: #{tpu_custom_call.1} parent=47 // pred_check_branch
          %578 = sbr.rel (%p576) target = $region56
        $region55: #{tpu_custom_call.1} parent=47 // pred_region
          %s580 = ssub.s32 128, 128
          %581 = vsyncadd %s572, %s580
          %s582 = smul.addr %s22, 128
          %s583 = scalar_lea.hbm %s7, %s582
          %s585 = sshll.u32 %s575, 4
          %s586 = int_to_ptr.vmem [resolvable:$true] %s585
          %588 = dma.vmem_to_hbm [thread:$0]  %s586, 128, %s583, %s572
        $region56: #{tpu_custom_call.1} parent=47 // pred_fallthru
          _
      $region48: #{tpu_custom_call.1} parent=5 // pred_fallthru
        _
      %p589 = scmp.le.s32.totalorder 2, %s17
      // Predicated region
      $region57: #{tpu_custom_call.1} parent=5 // pred_check
        %p590 = pneg %p589
      $region58: #{tpu_custom_call.1} parent=5 // pred_check_branch
        %592 = sbr.rel (%p590) target = $region60
      $region59: #{tpu_custom_call.1} parent=5 // pred_region
        %s593 = ssub.s32 %s17, 2
        // Predicated region
        $region61: #{tpu_custom_call.1} parent=59 // pred_check
          %p594 = pneg %p198
        $region62: #{tpu_custom_call.1} parent=59 // pred_check_branch
          %596 = sbr.rel (%p594) target = $region64
        $region63: #{tpu_custom_call.1} parent=59 // pred_region
          %s597 = sand.u32 %s183, 1
          %s598 = scalar_lea.sflag [#allocation5], %s597
          %s599 = sand.u32 %s183, 1
          %s600 = smul.addr %s599, 8
          %s601 = scalar_lea.vmem [#allocation6], %s600
          %602 = dma.done %s598, 128
        $region64: #{tpu_custom_call.1} parent=59 // pred_fallthru
          _
      $region60: #{tpu_custom_call.1} parent=5 // pred_fallthru
        _
    $region6: #{tpu_custom_call.1} parent=1 // loop_footer
      %s21 = sadd.s32 1, %s17
    $region7: #{tpu_custom_call.1} parent=1 // loop_footer_branch
      %16 = sbr.rel target = $region3
    $region8: #{tpu_custom_call.1} parent=1 // loop_exit
      _
    %603 = vsyncpa [#allocation4], 1
    %s604 = scalar_lea.sflag [#allocation4], 1
    %605 = vsyncpa %s604, 1
    %606 = vsyncpa [#allocation5], 1
    %s607 = scalar_lea.sflag [#allocation5], 1
    %608 = vsyncpa %s607, 1

</llo_original>
